<compile_context>
chip_gen: v5e
topology: v5e:2x2
jax: 0.10.0
libtpu: 0.0.40
codegen_flags: <defaults>
</compile_context>

<pallas_src>
import jax
import jax.numpy as jnp
from jax import lax
from jax.experimental import pallas as pl
from jax.experimental.pallas import tpu as pltpu


# ----------------------------- configuration -----------------------------

class _NS:
    def __init__(self, **kw):
        self.__dict__.update(kw)


CFG = _NS(
    MODEL=_NS(IMGSIZE=(16, 16)),
    PREDICTION=_NS(NUMPRED=4),
)

LANE = 128                 # TPU lane width — every feature axis padded to this
PATCH = 4                  # spatial patch size (conv-as-matmul stride)
C_HID = LANE               # spatial hidden width (lane-dense)
T_HID = LANE               # temporal hidden width (lane-dense)
T_K = 3                    # temporal conv kernel size ("same" padding)


# ------------------------------ fused kernel --------------------------------

def _fused_call(patches, w_embed, wpack, bpack, *, S, F, G):
    """Run the fused spatial+temporal forward.

    patches : (B, S*P, 48)  bf16 per-patch pixels
    w_embed : (48, 128)     bf16 patch-embedding weight
    wpack   : (3, 128, 128) bf16: [pose head (centering + 1/P folded),
                                   fused temporal taps (rows 0:F,F:2F,2F:3F),
                                   temporal output head]
    bpack   : (4, 128)      f32 biases [b1, b2(centered), bt, bo]
    Returns (G, Rb, 128) f32 spatial pose and temporal pose, Rb = (B/G)*S.
    """
    B, SP, D = patches.shape
    assert B % G == 0 and SP % S == 0 and 3 * F <= LANE
    Bg = B // G
    Rp = Bg * SP                    # patch rows per grid step
    Rb = Bg * S                     # frame rows per grid step
    patches_g = patches.reshape(G, Rp, D)
    NW, NB = wpack.shape[0], bpack.shape[0]

    def kernel(patch_ref, wemb_ref, w_ref, b_ref, sp_ref, tp_ref):
        P = Rp // Rb
        # --- spatial backbone: one tall patch-embedding matmul (bf16 x bf16,
        #     f32 accumulation), then mean-pool over patches as a sublane sum
        #     (the 1/P scale is folded into w_ref[0] on the host).
        h = jnp.dot(patch_ref[...], wemb_ref[...],
                    preferred_element_type=jnp.float32)                     # (Rp, C)
        h = jnp.maximum(h + b_ref[0:1, :], 0.0)
        pooled = h.reshape(Rb, P, LANE).sum(axis=1)                         # (Rb, C)

        # --- pose head; root-centering (x - x[:,:1,:]) and the 1/P pooling
        #     scale are folded into w_ref[1]/b_ref[1] (joint-0 lanes and all
        #     pad lanes are exactly 0.0).
        pose = jnp.dot(pooled.astype(jnp.bfloat16), w_ref[0],
                       preferred_element_type=jnp.float32) + b_ref[1:2, :]  # (Rb, 128)
        sp_ref[...] = pose

        # --- temporal kernel-3 "same" conv, fused into a single matmul:
        #     build the (Rb, 3F) window in-register with XLU rolls.
        s_idx = lax.broadcasted_iota(jnp.int32, (Rb, LANE), 0) % S
        prev = jnp.where(s_idx == 0, 0.0, pltpu.roll(pose, 1, 0))           # pose[t-1]
        nxt = jnp.where(s_idx == S - 1, 0.0, pltpu.roll(pose, Rb - 1, 0))   # pose[t+1]
        # lanes 0:F = t-1 tap, F:2F = t tap, 2F:3F = t+1 tap (no collisions:
        # pose lanes >= F are exactly zero).
        lhs = prev + pltpu.roll(pose, F, 1) + pltpu.roll(nxt, 2 * F, 1)
        ht = jnp.maximum(
            jnp.dot(lhs.astype(jnp.bfloat16), w_ref[1],
                    preferred_element_type=jnp.float32) + b_ref[2:3, :], 0.0)
        tp_ref[...] = jnp.dot(ht.astype(jnp.bfloat16), w_ref[2],
                              preferred_element_type=jnp.float32) + b_ref[3:4, :]

    out_shape = (jax.ShapeDtypeStruct((G, Rb, LANE), jnp.float32),
                 jax.ShapeDtypeStruct((G, Rb, LANE), jnp.float32))
    return pl.pallas_call(
        kernel,
        out_shape=out_shape,
        grid=(G,),
        in_specs=[
            pl.BlockSpec((None, Rp, D), lambda i: (i, 0, 0)),     # per-step patch slab
            pl.BlockSpec((D, LANE), lambda i: (0, 0)),            # embed weight (resident)
            pl.BlockSpec((NW, LANE, LANE), lambda i: (0, 0, 0)),  # packed weights (resident)
            pl.BlockSpec((NB, LANE), lambda i: (0, 0)),           # packed biases (resident)
        ],
        out_specs=[
            pl.BlockSpec((None, Rb, LANE), lambda i: (i, 0, 0)),  # lane-dense (Rb,128) stores
            pl.BlockSpec((None, Rb, LANE), lambda i: (i, 0, 0)),
        ],
        compiler_params=pltpu.CompilerParams(
            dimension_semantics=("parallel",),        # v7x: 2 TCs split the batch halves
            vmem_limit_bytes=32 * 1024 * 1024,        # explicit guard for IMGSIZE/S scaling
        ),
    )(patches_g, w_embed, wpack, bpack)


# ------------------------------ host-side glue ------------------------------

def _patchify(images):
    """(B, S, 3, H, W) -> per-patch pixel matrix (B, S*P, 3*PATCH*PATCH), f32."""
    B, S, C, H, W = images.shape
    hp, wp = H // PATCH, W // PATCH
    D = C * PATCH * PATCH
    x = images.reshape(B * S, C, hp, PATCH, wp, PATCH)
    x = x.transpose(0, 2, 4, 1, 3, 5).reshape(B, S * hp * wp, D)
    return x


# ------------------------------ parameter init ------------------------------

def init_params(cfg, key):
    J = cfg.PREDICTION.NUMPRED
    F = J * 3
    H, W = cfg.MODEL.IMGSIZE
    P = (H // PATCH) * (W // PATCH)
    D = 3 * PATCH * PATCH
    k1, k2, k3, k4 = jax.random.split(key, 4)

    # logical (unpadded) surrogate weights, f32
    w1 = jax.random.normal(k1, (D, C_HID), jnp.float32) / jnp.sqrt(D)
    b1 = jnp.zeros((C_HID,), jnp.float32)
    w2 = jax.random.normal(k2, (C_HID, F), jnp.float32) / jnp.sqrt(C_HID)
    b2 = jnp.zeros((F,), jnp.float32)
    wt = jax.random.normal(k3, (T_K * F, T_HID), jnp.float32) / jnp.sqrt(T_K * F)
    bt = jnp.zeros((T_HID,), jnp.float32)
    wo = jax.random.normal(k4, (T_HID, F), jnp.float32) / jnp.sqrt(T_HID)
    bo = jnp.zeros((F,), jnp.float32)

    # Fold the exact root-centering (x - x[:, :1]) into the pose head:
    # joint-0 columns become exactly 0.0 and every other column c becomes
    # w[:,c] - w[:, c mod 3].  Root joint stays bit-exact zero.
    w2c = w2 - jnp.tile(w2[:, 0:3], (1, J))
    b2c = b2 - jnp.tile(b2[0:3], (J,))
    # Fold the 1/P mean-pool scale into the pose head (kernel uses a patch SUM).
    w2c = w2c / P

    def pad2(m):
        out = jnp.zeros((LANE, LANE), jnp.float32)
        return out.at[:m.shape[0], :m.shape[1]].set(m)

    def pad1(v):
        out = jnp.zeros((LANE,), jnp.float32)
        return out.at[:v.shape[0]].set(v)

    wpack = jnp.stack([
        pad2(w2c),   # 0: pose head (centering + 1/P folded in)
        pad2(wt),    # 1: fused temporal taps — rows [0:F)=t-1, [F:2F)=t, [2F:3F)=t+1
        pad2(wo),    # 2: temporal output head
    ]).astype(jnp.bfloat16)
    bpack = jnp.stack([pad1(b1), pad1(b2c), pad1(bt), pad1(bo)])   # f32
    return {
        "w_embed": w1.astype(jnp.bfloat16),   # (48, 128) bf16
        "wpack": wpack,                       # (3, 128, 128) bf16
        "bpack": bpack,                       # (4, 128) f32
    }


# ------------------------------ forward pass --------------------------------

@jax.jit
def spatial_temporal_forward(images, params):
    J = CFG.PREDICTION.NUMPRED
    F = J * 3
    assert images.ndim == 5 and images.shape[2] == 3
    B, S = images.shape[0], images.shape[1]

    patches = _patchify(images).astype(jnp.bfloat16)       # (B, S*P, 48) bf16
    # G=2 gives v7x's two TensorCores one parallel step each; a single extra
    # grid step costs ~0.35us on single-TC chips (v5e/v6e) — negligible.
    G = 2 if (B >= 2 and B % 2 == 0) else 1

    sp, tp = _fused_call(patches, params["w_embed"], params["wpack"],
                         params["bpack"], S=S, F=F, G=G)

    sp = sp.reshape(B, S, LANE)[:, :, :F].reshape(B, S, J, 3)
    tp = tp.reshape(B, S, LANE)[:, :, :F].reshape(B, S, J, 3)
    return {"spatialPredPos": sp, "temporalPredPos": tp}


# ----------------------- pure-jnp reference (check only) --------------------

def _reference_forward(images, params):
    """Same math in plain jnp/f32 from the bf16-stored params; uses the
    UN-fused temporal taps so the in-kernel lane-roll packing is validated."""
    J = CFG.PREDICTION.NUMPRED
    F = J * 3
    B, S = images.shape[0], images.shape[1]
    P = (images.shape[3] // PATCH) * (images.shape[4] // PATCH)
    we = params["w_embed"].astype(jnp.float32)
    w = params["wpack"].astype(jnp.float32)
    b = params["bpack"]

    patches = _patchify(images).astype(jnp.bfloat16).astype(jnp.float32)
    h = jnp.maximum(jnp.einsum("bpd,dc->bpc", patches, we) + b[0][None, None, :], 0.0)
    pooled = h.reshape(B, S, P, LANE).sum(axis=2)                  # 1/P folded into w[0]
    pose = pooled @ w[0] + b[1][None, None, :]                     # (B, S, 128)

    prev = jnp.pad(pose, ((0, 0), (1, 0), (0, 0)))[:, :-1]
    nxt = jnp.pad(pose, ((0, 0), (0, 1), (0, 0)))[:, 1:]
    wt1, wt2, wt3 = w[1][0:F], w[1][F:2 * F], w[1][2 * F:3 * F]
    ht = jnp.maximum(prev[..., :F] @ wt1 + pose[..., :F] @ wt2 + nxt[..., :F] @ wt3
                     + b[2][None, None, :], 0.0)
    tp = ht @ w[2] + b[3][None, None, :]
    return (pose[:, :, :F].reshape(B, S, J, 3),
            tp[:, :, :F].reshape(B, S, J, 3))


# ----------------------------------- main -----------------------------------

if __name__ == "__main__":
    B, S = 2, 8
    Hs, Ws = CFG.MODEL.IMGSIZE
    J = CFG.PREDICTION.NUMPRED

    key = jax.random.PRNGKey(0)
    k_img, k_par = jax.random.split(key)
    images = jax.random.normal(k_img, (B, S, 3, Hs, Ws), jnp.float32)
    params = init_params(CFG, k_par)

    out = jax.block_until_ready(spatial_temporal_forward(images, params))

    assert out["spatialPredPos"].shape == (B, S, J, 3)
    assert out["temporalPredPos"].shape == (B, S, J, 3)
    # root joint is exactly zero after the (weight-folded) root centering
    assert float(jnp.max(jnp.abs(out["spatialPredPos"][:, :, 0, :]))) == 0.0

    # compare against a pure-jnp f32 reference of the same math
    # (bf16 operand / f32-accumulation path in the kernel -> ~1% worst case)
    ref_sp, ref_tp = _reference_forward(images, params)
    assert jnp.allclose(out["spatialPredPos"], ref_sp, rtol=2e-2, atol=2e-2), (
        float(jnp.max(jnp.abs(out["spatialPredPos"] - ref_sp))))
    assert jnp.allclose(out["temporalPredPos"], ref_tp, rtol=2e-2, atol=2e-2), (
        float(jnp.max(jnp.abs(out["temporalPredPos"] - ref_tp))))

    print("KERNEL_OK")
</pallas_src>

<mosaic_0001>
module attributes {stable_mosaic.version = 11 : i64} {
  func.func @kernel(%arg0: i32, %arg1: memref<1x128x48xbf16, #tpu.memory_space<vmem>>, %arg2: memref<48x128xbf16, #tpu.memory_space<vmem>>, %arg3: memref<3x128x128xbf16, #tpu.memory_space<vmem>>, %arg4: memref<4x128xf32, #tpu.memory_space<vmem>>, %arg5: memref<1x8x128xf32, #tpu.memory_space<vmem>>, %arg6: memref<1x8x128xf32, #tpu.memory_space<vmem>>) attributes {dimension_semantics = [#tpu.dimension_semantics<parallel>], iteration_bounds = array<i64: 2>, scalar_prefetch = 0 : i64, scratch_operands = 0 : i64, tpu.core_type = #tpu.core_type<tc>, window_params = [{transform_indices = @transform_0, window_bounds = array<i64: 1, 128, 48>}, {pipeline_mode = #tpu.pipeline_mode<synchronous>, transform_indices = @transform_1, window_bounds = array<i64: 48, 128>}, {pipeline_mode = #tpu.pipeline_mode<synchronous>, transform_indices = @transform_2, window_bounds = array<i64: 3, 128, 128>}, {pipeline_mode = #tpu.pipeline_mode<synchronous>, transform_indices = @transform_3, window_bounds = array<i64: 4, 128>}, {transform_indices = @transform_4, window_bounds = array<i64: 1, 8, 128>}, {transform_indices = @transform_5, window_bounds = array<i64: 1, 8, 128>}]} {
    %c0 = arith.constant 0 : index
    %c0_0 = arith.constant 0 : index
    %c0_1 = arith.constant 0 : index
    %0 = vector.load %arg1[%c0, %c0_0, %c0_1] : memref<1x128x48xbf16, #tpu.memory_space<vmem>>, vector<1x128x48xbf16>
    %1 = vector.shape_cast %0 : vector<1x128x48xbf16> to vector<128x48xbf16>
    %c0_2 = arith.constant 0 : index
    %c0_3 = arith.constant 0 : index
    %2 = vector.load %arg2[%c0_2, %c0_3] : memref<48x128xbf16, #tpu.memory_space<vmem>>, vector<48x128xbf16>
    %cst = arith.constant dense<0.000000e+00> : vector<128x128xf32>
    %3 = tpu.matmul %1, %2, %cst {dimension_numbers = #tpu.dot_dimension_numbers<[1], [0], [0], [1], [0, 0, 1, 1], [], []>} : vector<128x48xbf16>, vector<48x128xbf16>, vector<128x128xf32> -> vector<128x128xf32>
    %c0_4 = arith.constant 0 : index
    %c0_5 = arith.constant 0 : index
    %4 = vector.load %arg4[%c0_4, %c0_5] : memref<4x128xf32, #tpu.memory_space<vmem>>, vector<1x128xf32>
    %5 = vector.broadcast %4 : vector<1x128xf32> to vector<128x128xf32>
    %6 = arith.addf %3, %5 : vector<128x128xf32>
    %cst_6 = arith.constant 0.000000e+00 : f32
    %7 = vector.broadcast %cst_6 : f32 to vector<128x128xf32>
    %8 = arith.maximumf %6, %7 : vector<128x128xf32>
    %9 = vector.shape_cast %8 : vector<128x128xf32> to vector<8x16x128xf32>
    %cst_7 = arith.constant dense<0.000000e+00> : vector<8x128xf32>
    %10 = vector.multi_reduction <add>, %9, %cst_7 [1] : vector<8x16x128xf32> to vector<8x128xf32>
    %11 = arith.truncf %10 : vector<8x128xf32> to vector<8x128xbf16>
    %c0_8 = arith.constant 0 : index
    %c0_9 = arith.constant 0 : index
    %c0_10 = arith.constant 0 : index
    %12 = vector.load %arg3[%c0_8, %c0_9, %c0_10] : memref<3x128x128xbf16, #tpu.memory_space<vmem>>, vector<1x128x128xbf16>
    %13 = vector.shape_cast %12 : vector<1x128x128xbf16> to vector<128x128xbf16>
    %cst_11 = arith.constant dense<0.000000e+00> : vector<8x128xf32>
    %14 = tpu.matmul %11, %13, %cst_11 {dimension_numbers = #tpu.dot_dimension_numbers<[1], [0], [0], [1], [0, 0, 1, 1], [], []>} : vector<8x128xbf16>, vector<128x128xbf16>, vector<8x128xf32> -> vector<8x128xf32>
    %c1 = arith.constant 1 : index
    %c0_12 = arith.constant 0 : index
    %15 = vector.load %arg4[%c1, %c0_12] : memref<4x128xf32, #tpu.memory_space<vmem>>, vector<1x128xf32>
    %16 = vector.broadcast %15 : vector<1x128xf32> to vector<8x128xf32>
    %17 = arith.addf %14, %16 : vector<8x128xf32>
    %c0_13 = arith.constant 0 : index
    %c0_14 = arith.constant 0 : index
    %c0_15 = arith.constant 0 : index
    %18 = vector.load %arg5[%c0_13, %c0_14, %c0_15] : memref<1x8x128xf32, #tpu.memory_space<vmem>>, vector<1x8x128xf32>
    %19 = vector.shape_cast %18 : vector<1x8x128xf32> to vector<8x128xf32>
    %20 = vector.shape_cast %17 : vector<8x128xf32> to vector<1x8x128xf32>
    tpu.vector_store %arg5[%c0_13, %c0_14, %c0_15], %20 {strides = array<i32>} : memref<1x8x128xf32, #tpu.memory_space<vmem>>, vector<1x8x128xf32>,
    %21 = tpu.iota {dimensions = array<i32: 0>} : vector<8x128xi32>
    %c8_i32 = arith.constant 8 : i32
    %c0_i32 = arith.constant 0 : i32
    %22 = arith.cmpi eq, %c8_i32, %c0_i32 : i32
    %c1_i32 = arith.constant 1 : i32
    %23 = arith.select %22, %c1_i32, %c8_i32 : i32
    %24 = vector.broadcast %23 : i32 to vector<8x128xi32>
    %25 = arith.remsi %21, %24 : vector<8x128xi32>
    %c0_i32_16 = arith.constant 0 : i32
    %26 = vector.broadcast %c0_i32_16 : i32 to vector<8x128xi32>
    %27 = arith.cmpi ne, %25, %26 : vector<8x128xi32>
    %c0_i32_17 = arith.constant 0 : i32
    %28 = vector.broadcast %c0_i32_17 : i32 to vector<8x128xi32>
    %29 = arith.cmpi slt, %25, %28 : vector<8x128xi32>
    %c0_i32_18 = arith.constant 0 : i32
    %30 = arith.cmpi slt, %23, %c0_i32_18 : i32
    %31 = vector.broadcast %30 : i1 to vector<8x128xi1>
    %32 = vector.broadcast %31 : vector<8x128xi1> to vector<8x128xi1>
    %33 = arith.xori %29, %32 : vector<8x128xi1>
    %34 = arith.andi %33, %27 : vector<8x128xi1>
    %35 = vector.broadcast %23 : i32 to vector<8x128xi32>
    %36 = arith.addi %25, %35 : vector<8x128xi32>
    %37 = arith.select %34, %36, %25 : vector<8x128xi1>, vector<8x128xi32>
    %c0_i32_19 = arith.constant 0 : i32
    %38 = vector.broadcast %c0_i32_19 : i32 to vector<8x128xi32>
    %39 = arith.cmpi eq, %37, %38 : vector<8x128xi32>
    %c1_i32_20 = arith.constant 1 : i32
    %40 = tpu.dynamic_rotate %17 by %c1_i32_20 dim 0 : vector<8x128xf32>, i32 -> vector<8x128xf32>
    %cst_21 = arith.constant 0.000000e+00 : f32
    %41 = vector.broadcast %cst_21 : f32 to vector<8x128xf32>
    %42 = arith.select %39, %41, %40 : vector<8x128xi1>, vector<8x128xf32>
    %c7_i32 = arith.constant 7 : i32
    %43 = vector.broadcast %c7_i32 : i32 to vector<8x128xi32>
    %44 = arith.cmpi eq, %37, %43 : vector<8x128xi32>
    %c7_i32_22 = arith.constant 7 : i32
    %45 = tpu.dynamic_rotate %17 by %c7_i32_22 dim 0 : vector<8x128xf32>, i32 -> vector<8x128xf32>
    %cst_23 = arith.constant 0.000000e+00 : f32
    %46 = vector.broadcast %cst_23 : f32 to vector<8x128xf32>
    %47 = arith.select %44, %46, %45 : vector<8x128xi1>, vector<8x128xf32>
    %c12_i32 = arith.constant 12 : i32
    %48 = tpu.dynamic_rotate %17 by %c12_i32 dim 1 : vector<8x128xf32>, i32 -> vector<8x128xf32>
    %49 = arith.addf %42, %48 : vector<8x128xf32>
    %c24_i32 = arith.constant 24 : i32
    %50 = tpu.dynamic_rotate %47 by %c24_i32 dim 1 : vector<8x128xf32>, i32 -> vector<8x128xf32>
    %51 = arith.addf %49, %50 : vector<8x128xf32>
    %52 = arith.truncf %51 : vector<8x128xf32> to vector<8x128xbf16>
    %c1_24 = arith.constant 1 : index
    %c0_25 = arith.constant 0 : index
    %c0_26 = arith.constant 0 : index
    %53 = vector.load %arg3[%c1_24, %c0_25, %c0_26] : memref<3x128x128xbf16, #tpu.memory_space<vmem>>, vector<1x128x128xbf16>
    %54 = vector.shape_cast %53 : vector<1x128x128xbf16> to vector<128x128xbf16>
    %cst_27 = arith.constant dense<0.000000e+00> : vector<8x128xf32>
    %55 = tpu.matmul %52, %54, %cst_27 {dimension_numbers = #tpu.dot_dimension_numbers<[1], [0], [0], [1], [0, 0, 1, 1], [], []>} : vector<8x128xbf16>, vector<128x128xbf16>, vector<8x128xf32> -> vector<8x128xf32>
    %c2 = arith.constant 2 : index
    %c0_28 = arith.constant 0 : index
    %56 = vector.load %arg4[%c2, %c0_28] : memref<4x128xf32, #tpu.memory_space<vmem>>, vector<1x128xf32>
    %57 = vector.broadcast %56 : vector<1x128xf32> to vector<8x128xf32>
    %58 = arith.addf %55, %57 : vector<8x128xf32>
    %cst_29 = arith.constant 0.000000e+00 : f32
    %59 = vector.broadcast %cst_29 : f32 to vector<8x128xf32>
    %60 = arith.maximumf %58, %59 : vector<8x128xf32>
    %61 = arith.truncf %60 : vector<8x128xf32> to vector<8x128xbf16>
    %c2_30 = arith.constant 2 : index
    %c0_31 = arith.constant 0 : index
    %c0_32 = arith.constant 0 : index
    %62 = vector.load %arg3[%c2_30, %c0_31, %c0_32] : memref<3x128x128xbf16, #tpu.memory_space<vmem>>, vector<1x128x128xbf16>
    %63 = vector.shape_cast %62 : vector<1x128x128xbf16> to vector<128x128xbf16>
    %cst_33 = arith.constant dense<0.000000e+00> : vector<8x128xf32>
    %64 = tpu.matmul %61, %63, %cst_33 {dimension_numbers = #tpu.dot_dimension_numbers<[1], [0], [0], [1], [0, 0, 1, 1], [], []>} : vector<8x128xbf16>, vector<128x128xbf16>, vector<8x128xf32> -> vector<8x128xf32>
    %c3 = arith.constant 3 : index
    %c0_34 = arith.constant 0 : index
    %65 = vector.load %arg4[%c3, %c0_34] : memref<4x128xf32, #tpu.memory_space<vmem>>, vector<1x128xf32>
    %66 = vector.broadcast %65 : vector<1x128xf32> to vector<8x128xf32>
    %67 = arith.addf %64, %66 : vector<8x128xf32>
    %c0_35 = arith.constant 0 : index
    %c0_36 = arith.constant 0 : index
    %c0_37 = arith.constant 0 : index
    %68 = vector.load %arg6[%c0_35, %c0_36, %c0_37] : memref<1x8x128xf32, #tpu.memory_space<vmem>>, vector<1x8x128xf32>
    %69 = vector.shape_cast %68 : vector<1x8x128xf32> to vector<8x128xf32>
    %70 = vector.shape_cast %67 : vector<8x128xf32> to vector<1x8x128xf32>
    tpu.vector_store %arg6[%c0_35, %c0_36, %c0_37], %70 {strides = array<i32>} : memref<1x8x128xf32, #tpu.memory_space<vmem>>, vector<1x8x128xf32>,
    return
  }
  func.func @transform_0(%arg0: i32) -> (i32, i32, i32) {
    %c0_i32 = arith.constant 0 : i32
    %c0_i32_0 = arith.constant 0 : i32
    %c0_i32_1 = arith.constant 0 : i32
    return %arg0, %c0_i32, %c0_i32_0 : i32, i32, i32
  }
  func.func @transform_1(%arg0: i32) -> (i32, i32) {
    %c0_i32 = arith.constant 0 : i32
    %c0_i32_0 = arith.constant 0 : i32
    %c0_i32_1 = arith.constant 0 : i32
    return %c0_i32, %c0_i32_0 : i32, i32
  }
  func.func @transform_2(%arg0: i32) -> (i32, i32, i32) {
    %c0_i32 = arith.constant 0 : i32
    %c0_i32_0 = arith.constant 0 : i32
    %c0_i32_1 = arith.constant 0 : i32
    %c0_i32_2 = arith.constant 0 : i32
    return %c0_i32, %c0_i32_0, %c0_i32_1 : i32, i32, i32
  }
  func.func @transform_3(%arg0: i32) -> (i32, i32) {
    %c0_i32 = arith.constant 0 : i32
    %c0_i32_0 = arith.constant 0 : i32
    %c0_i32_1 = arith.constant 0 : i32
    return %c0_i32, %c0_i32_0 : i32, i32
  }
  func.func @transform_4(%arg0: i32) -> (i32, i32, i32) {
    %c0_i32 = arith.constant 0 : i32
    %c0_i32_0 = arith.constant 0 : i32
    %c0_i32_1 = arith.constant 0 : i32
    return %arg0, %c0_i32, %c0_i32_0 : i32, i32, i32
  }
  func.func @transform_5(%arg0: i32) -> (i32, i32, i32) {
    %c0_i32 = arith.constant 0 : i32
    %c0_i32_0 = arith.constant 0 : i32
    %c0_i32_1 = arith.constant 0 : i32
    return %arg0, %c0_i32, %c0_i32_0 : i32, i32, i32
  }
}

</mosaic_0001>

<llo_original>
// kernel: spatial_temporal_forward.1
$region0: #{spatial_temporal_forward.1}
  #allocation0 [shape = 'u32[]', space=smem, size = 0x4, offset = 0x4, fixed_abs, tag = 'smem constant byte address 0x4 - core index']
  #allocation1 [shape = 'u32[72,128]{1,0:T(1,128)}', space=vmem, size = 0x9000, scoped, tag = 'internal scratch']
  %s0 = inlined_call_operand.vmem [shape: bf16[2,128,48], index: 0, kind: input, shape index: {}]
  %s1 = inlined_call_operand.vmem [shape: bf16[48,128], index: 1, kind: input, shape index: {}]
  %s2 = inlined_call_operand.vmem [shape: bf16[3,128,128], index: 2, kind: input, shape index: {}]
  %s3 = inlined_call_operand.vmem [shape: f32[4,128], index: 3, kind: input, shape index: {}]
  %s4 = inlined_call_operand.vmem [shape: f32[2,8,128], index: 4, kind: output, shape index: {0}]
  %s5 = inlined_call_operand.vmem [shape: f32[2,8,128], index: 5, kind: output, shape index: {1}]
  %6 = xla_tuple %s4, %s5
  %s7 = sld [smem:[#allocation0]]
  $region57: #{spatial_temporal_forward.1} parent=0
    _
  %s9 = ssub.s32 1, %s7
  %s10 = scalar_select 0, %s9, %s7
  loop: start=0, step=1, limit=4
  $region2: #{spatial_temporal_forward.1} parent=0 // loop_pre_header
    _
  $region3: #{spatial_temporal_forward.1} parent=0 // loop_header
    %s12 = sphi 0, %s16
    %p13 = scmp.ge.s32.totalorder %s12, 4
    %s22 = sphi 0, %s24
    %s25 = sphi 0, %s22
    %s26 = sphi 0, %s25
    %s42 = sphi 0, %s26
    %s46 = sphi 0, %s46
    %s48 = sphi 0, %s46
    %s49 = sphi 0, %s48
    %s63 = sphi 0, %s49
    %s67 = sphi 0, %s67
    %s69 = sphi 0, %s67
    %s70 = sphi 0, %s69
    %s84 = sphi 0, %s70
    %s88 = sphi 0, %s88
    %s90 = sphi 0, %s88
    %s91 = sphi 0, %s90
    %s105 = sphi 0, %s91
    %s111 = sphi 0, %s113
    %s114 = sphi 0, %s111
    %s115 = sphi 0, %s114
    %s131 = sphi 0, %s115
    %s137 = sphi 0, %s139
    %s140 = sphi 0, %s137
    %s141 = sphi 0, %s140
    %s157 = sphi 0, %s141
  $region4: #{spatial_temporal_forward.1} parent=0 // loop_header_branch
    %15 = sbr.rel (%p13) target = $region8
  $region5: #{spatial_temporal_forward.1} parent=0 // loop_body
    %s17 = ssub.s32 %s12, 1
    %s18 = ssub.s32 %s12, 2
    %s19 = sadd.s32 %s12, 1
    %s20 = ssub.s32 %s12, %s19
    %p21 = scmp.eq.s32.totalorder %s20, 0
    %s23 = sadd.s32 %s22, 1
    %s24 = scalar_select %p21, %s22, %s23
    %p27 = pneg %p21
    %p28 = scmp.eq.s32.totalorder %s12, 1
    %p29 = por %p27, %p28
    %p30 = scmp.ne.s32.totalorder %s22, %s25
    %p31 = scmp.eq.s32.totalorder %s12, 0
    %p32 = por %p30, %p31
    %p33 = scmp.ne.s32.totalorder %s22, %s25
    %p34 = scmp.eq.s32.totalorder %s17, 1
    %p35 = por %p33, %p34
    %p36 = scmp.ne.s32.totalorder %s25, %s26
    %p37 = scmp.eq.s32.totalorder %s17, 0
    %p38 = por %p36, %p37
    %p39 = scmp.ne.s32.totalorder %s25, %s26
    %p40 = scmp.eq.s32.totalorder %s18, 1
    %p41 = por %p39, %p40
    %p43 = scmp.ne.s32.totalorder %s26, %s42
    %p44 = scmp.eq.s32.totalorder %s18, 0
    %p45 = por %p43, %p44
    %s47 = sadd.s32 %s46, 1
    %p50 = scmp.eq.s32.totalorder %s12, 1
    %p51 = scmp.ne.s32.totalorder %s46, %s48
    %p52 = scmp.eq.s32.totalorder %s12, 0
    %p53 = por %p51, %p52
    %p54 = scmp.ne.s32.totalorder %s46, %s48
    %p55 = scmp.eq.s32.totalorder %s17, 1
    %p56 = por %p54, %p55
    %p57 = scmp.ne.s32.totalorder %s48, %s49
    %p58 = scmp.eq.s32.totalorder %s17, 0
    %p59 = por %p57, %p58
    %p60 = scmp.ne.s32.totalorder %s48, %s49
    %p61 = scmp.eq.s32.totalorder %s18, 1
    %p62 = por %p60, %p61
    %p64 = scmp.ne.s32.totalorder %s49, %s63
    %p65 = scmp.eq.s32.totalorder %s18, 0
    %p66 = por %p64, %p65
    %s68 = sadd.s32 %s67, 1
    %p71 = scmp.eq.s32.totalorder %s12, 1
    %p72 = scmp.ne.s32.totalorder %s67, %s69
    %p73 = scmp.eq.s32.totalorder %s12, 0
    %p74 = por %p72, %p73
    %p75 = scmp.ne.s32.totalorder %s67, %s69
    %p76 = scmp.eq.s32.totalorder %s17, 1
    %p77 = por %p75, %p76
    %p78 = scmp.ne.s32.totalorder %s69, %s70
    %p79 = scmp.eq.s32.totalorder %s17, 0
    %p80 = por %p78, %p79
    %p81 = scmp.ne.s32.totalorder %s69, %s70
    %p82 = scmp.eq.s32.totalorder %s18, 1
    %p83 = por %p81, %p82
    %p85 = scmp.ne.s32.totalorder %s70, %s84
    %p86 = scmp.eq.s32.totalorder %s18, 0
    %p87 = por %p85, %p86
    %s89 = sadd.s32 %s88, 1
    %p92 = scmp.eq.s32.totalorder %s12, 1
    %p93 = scmp.ne.s32.totalorder %s88, %s90
    %p94 = scmp.eq.s32.totalorder %s12, 0
    %p95 = por %p93, %p94
    %p96 = scmp.ne.s32.totalorder %s88, %s90
    %p97 = scmp.eq.s32.totalorder %s17, 1
    %p98 = por %p96, %p97
    %p99 = scmp.ne.s32.totalorder %s90, %s91
    %p100 = scmp.eq.s32.totalorder %s17, 0
    %p101 = por %p99, %p100
    %p102 = scmp.ne.s32.totalorder %s90, %s91
    %p103 = scmp.eq.s32.totalorder %s18, 1
    %p104 = por %p102, %p103
    %p106 = scmp.ne.s32.totalorder %s91, %s105
    %p107 = scmp.eq.s32.totalorder %s18, 0
    %p108 = por %p106, %p107
    %s109 = ssub.s32 %s12, %s19
    %p110 = scmp.eq.s32.totalorder %s109, 0
    %s112 = sadd.s32 %s111, 1
    %s113 = scalar_select %p110, %s111, %s112
    %p116 = pneg %p110
    %p117 = scmp.eq.s32.totalorder %s12, 1
    %p118 = por %p116, %p117
    %p119 = scmp.ne.s32.totalorder %s111, %s114
    %p120 = scmp.eq.s32.totalorder %s12, 0
    %p121 = por %p119, %p120
    %p122 = scmp.ne.s32.totalorder %s111, %s114
    %p123 = scmp.eq.s32.totalorder %s17, 1
    %p124 = por %p122, %p123
    %p125 = scmp.ne.s32.totalorder %s114, %s115
    %p126 = scmp.eq.s32.totalorder %s17, 0
    %p127 = por %p125, %p126
    %p128 = scmp.ne.s32.totalorder %s114, %s115
    %p129 = scmp.eq.s32.totalorder %s18, 1
    %p130 = por %p128, %p129
    %p132 = scmp.ne.s32.totalorder %s115, %s131
    %p133 = scmp.eq.s32.totalorder %s18, 0
    %p134 = por %p132, %p133
    %s135 = ssub.s32 %s12, %s19
    %p136 = scmp.eq.s32.totalorder %s135, 0
    %s138 = sadd.s32 %s137, 1
    %s139 = scalar_select %p136, %s137, %s138
    %p142 = pneg %p136
    %p143 = scmp.eq.s32.totalorder %s12, 1
    %p144 = por %p142, %p143
    %p145 = scmp.ne.s32.totalorder %s137, %s140
    %p146 = scmp.eq.s32.totalorder %s12, 0
    %p147 = por %p145, %p146
    %p148 = scmp.ne.s32.totalorder %s137, %s140
    %p149 = scmp.eq.s32.totalorder %s17, 1
    %p150 = por %p148, %p149
    %p151 = scmp.ne.s32.totalorder %s140, %s141
    %p152 = scmp.eq.s32.totalorder %s17, 0
    %p153 = por %p151, %p152
    %p154 = scmp.ne.s32.totalorder %s140, %s141
    %p155 = scmp.eq.s32.totalorder %s18, 1
    %p156 = por %p154, %p155
    %p158 = scmp.ne.s32.totalorder %s141, %s157
    %p159 = scmp.eq.s32.totalorder %s18, 0
    %p160 = por %p158, %p159
    %p161 = scmp.le.s32.totalorder 1, %s12
    %p162 = scmp.lt.s32.totalorder %s12, 3
    %p163 = pnand %p161, %p162
    %p164 = pneg %p163
    // Predicated region
    $region9: #{spatial_temporal_forward.1} parent=5 // pred_check
      _
    $region10: #{spatial_temporal_forward.1} parent=5 // pred_check_branch
      %166 = sbr.rel (%p163) target = $region12
    $region11: #{spatial_temporal_forward.1} parent=5 // pred_region
      %s167 = ssub.s32 %s12, 1
      // Predicated region
      $region13: #{spatial_temporal_forward.1} parent=11 // pred_check
        %p168 = pneg %p59
      $region14: #{spatial_temporal_forward.1} parent=11 // pred_check_branch
        %170 = sbr.rel (%p168) target = $region16
      $region15: #{spatial_temporal_forward.1} parent=11 // pred_region
        _
      $region16: #{spatial_temporal_forward.1} parent=11 // pred_fallthru
        _
      // Predicated region
      $region17: #{spatial_temporal_forward.1} parent=11 // pred_check
        %p171 = pneg %p80
      $region18: #{spatial_temporal_forward.1} parent=11 // pred_check_branch
        %173 = sbr.rel (%p171) target = $region20
      $region19: #{spatial_temporal_forward.1} parent=11 // pred_region
        _
      $region20: #{spatial_temporal_forward.1} parent=11 // pred_fallthru
        _
      // Predicated region
      $region21: #{spatial_temporal_forward.1} parent=11 // pred_check
        %p174 = pneg %p101
      $region22: #{spatial_temporal_forward.1} parent=11 // pred_check_branch
        %176 = sbr.rel (%p174) target = $region24
      $region23: #{spatial_temporal_forward.1} parent=11 // pred_region
        _
      $region24: #{spatial_temporal_forward.1} parent=11 // pred_fallthru
        _
    $region12: #{spatial_temporal_forward.1} parent=5 // pred_fallthru
      _
    %p177 = scmp.lt.s32.totalorder %s12, 2
    // Predicated region
    $region25: #{spatial_temporal_forward.1} parent=5 // pred_check
      %p178 = pneg %p177
    $region26: #{spatial_temporal_forward.1} parent=5 // pred_check_branch
      %180 = sbr.rel (%p178) target = $region28
    $region27: #{spatial_temporal_forward.1} parent=5 // pred_region
      // Predicated region
      $region29: #{spatial_temporal_forward.1} parent=27 // pred_check
        %p181 = pneg %p32
      $region30: #{spatial_temporal_forward.1} parent=27 // pred_check_branch
        %183 = sbr.rel (%p181) target = $region32
      $region31: #{spatial_temporal_forward.1} parent=27 // pred_region
        %p184 = scmp.lt.s32.totalorder %s12, 1
        %s185 = scalar_select %p184, %s12, 1
        %s186 = smul.addr %s185, 16
        %s187 = smul.addr %s186, 4
        %s188 = scalar_lea.vmem %s0, %s187
      $region32: #{spatial_temporal_forward.1} parent=27 // pred_fallthru
        _
    $region28: #{spatial_temporal_forward.1} parent=5 // pred_fallthru
      _
    %p189 = scmp.le.s32.totalorder 1, %s12
    %p190 = scmp.lt.s32.totalorder %s12, 3
    %p191 = pnand %p189, %p190
    %p192 = pneg %p191
    // Predicated region
    $region33: #{spatial_temporal_forward.1} parent=5 // pred_check
      _
    $region34: #{spatial_temporal_forward.1} parent=5 // pred_check_branch
      %194 = sbr.rel (%p191) target = $region36
    $region35: #{spatial_temporal_forward.1} parent=5 // pred_region
      %s195 = ssub.s32 %s12, 1
      %p196 = scmp.lt.s32.totalorder %s17, 1
      %s197 = scalar_select %p196, %s17, 1
      %s198 = smul.addr %s197, 16
      %s199 = smul.addr %s198, 4
      %s200 = scalar_lea.vmem %s0, %s199
      %p201 = pneg %p38
      %p202 = pneg %p35
      %p203 = pneg %p59
      %p204 = pneg %p56
      %p205 = pneg %p80
      %p206 = pneg %p77
      %p207 = pneg %p101
      %p208 = pneg %p98
      %p209 = pneg %p127
      %p210 = pneg %p124
      %p211 = scmp.lt.s32.totalorder %s17, 1
      %s212 = scalar_select %p211, %s17, 1
      %s213 = smul.addr %s212, 8
      %s214 = scalar_lea.vmem %s4, %s213
      %p215 = pneg %p153
      %p216 = pneg %p150
      %p217 = scmp.lt.s32.totalorder %s17, 1
      %s218 = scalar_select %p217, %s17, 1
      %s219 = smul.addr %s218, 8
      %s220 = scalar_lea.vmem %s5, %s219
      %p221 = scmp.lt.s32.totalorder %s17, 1
      %s222 = scalar_select %p221, %s17, 1
      %s223 = smul.addr %s222, 16
      %s224 = smul.addr %s223, 4
      %s225 = scalar_lea.vmem %s0, %s224
      %p226 = scmp.lt.s32.totalorder %s17, 1
      %s227 = scalar_select %p226, %s17, 1
      %s228 = smul.addr %s227, 8
      %s229 = scalar_lea.vmem %s4, %s228
      %p230 = scmp.lt.s32.totalorder %s17, 1
      %s231 = scalar_select %p230, %s17, 1
      %s232 = smul.addr %s231, 8
      %s233 = scalar_lea.vmem %s5, %s232
      %v235 = vld [vmem:[%s225] sm:$0xf]
      %v236 = vld [vmem:[%s225 + $0x4] sm:$0xf]
      %v237 = vld [vmem:[%s225 + $0x8] sm:$0xf]
      %v238 = vld [vmem:[%s225 + $0xc] sm:$0xf]
      %v239 = vld [vmem:[%s225 + $0x10] sm:$0xf]
      %v240 = vld [vmem:[%s225 + $0x14] sm:$0xf]
      %v241 = vld [vmem:[%s225 + $0x18] sm:$0xf]
      %v242 = vld [vmem:[%s225 + $0x1c] sm:$0xf]
      %v243 = vld [vmem:[%s225 + $0x20] sm:$0xf]
      %v244 = vld [vmem:[%s225 + $0x24] sm:$0xf]
      %v245 = vld [vmem:[%s225 + $0x28] sm:$0xf]
      %v246 = vld [vmem:[%s225 + $0x2c] sm:$0xf]
      %v247 = vld [vmem:[%s225 + $0x30] sm:$0xf]
      %v248 = vld [vmem:[%s225 + $0x34] sm:$0xf]
      %v249 = vld [vmem:[%s225 + $0x38] sm:$0xf]
      %v250 = vld [vmem:[%s225 + $0x3c] sm:$0xf]
      %v251 = vld [vmem:[%s1] sm:$0xf]
      %v252 = vld [vmem:[%s1 + $0x4] sm:$0xf]
      %v253 = vld [vmem:[%s1 + $0x8] sm:$0xf]
      %v254 = vld [vmem:[%s1 + $0xc] sm:$0xf]
      %v255 = vld [vmem:[%s1 + $0x10] sm:$0xf]
      %v256 = vld [vmem:[%s1 + $0x14] sm:$0xf]
      %v257 = vld [vmem:[%s3] sm:$0x1]
      %v258 = vperm.slane %v257, 0
      %v275 = vunpack.c.l.b16 %v235
      %v276 = vunpack.c.l.b16 %v236
      %v277 = vunpack.c.l.b16 %v237
      %v278 = vunpack.c.l.b16 %v238
      %v279 = vunpack.c.l.b16 %v239
      %v280 = vunpack.c.l.b16 %v240
      %v281 = vunpack.c.l.b16 %v241
      %v282 = vunpack.c.l.b16 %v242
      %v283 = vunpack.c.l.b16 %v243
      %v284 = vunpack.c.l.b16 %v244
      %v285 = vunpack.c.l.b16 %v245
      %v286 = vunpack.c.l.b16 %v246
      %v287 = vunpack.c.l.b16 %v247
      %v288 = vunpack.c.l.b16 %v248
      %v289 = vunpack.c.l.b16 %v249
      %v290 = vunpack.c.l.b16 %v250
      %v291 = vpack.c.b16 %v276, %v275
      %v292 = vpack.c.b16 %v278, %v277
      %v293 = vpack.c.b16 %v280, %v279
      %v294 = vpack.c.b16 %v282, %v281
      %v295 = vpack.c.b16 %v284, %v283
      %v296 = vpack.c.b16 %v286, %v285
      %v297 = vpack.c.b16 %v288, %v287
      %v298 = vpack.c.b16 %v290, %v289
      %v305 = vunpack.c.l.b16 %v251
      %v306 = vunpack.c.l.b16 %v252
      %v307 = vunpack.c.l.b16 %v253
      %v308 = vunpack.c.l.b16 %v254
      %v309 = vunpack.c.l.b16 %v255
      %v310 = vunpack.c.l.b16 %v256
      %v311 = vpack.c.b16 %v306, %v305
      %v312 = vpack.c.b16 %v308, %v307
      %v313 = vpack.c.b16 %v310, %v309
      %vm317 = vcmask 392192
      %v319 = vsel %vm317, %v291, 0
      %v322 = vsel %vm317, %v292, 0
      %v325 = vsel %vm317, %v293, 0
      %v328 = vsel %vm317, %v294, 0
      %v331 = vsel %vm317, %v295, 0
      %v334 = vsel %vm317, %v296, 0
      %v337 = vsel %vm317, %v297, 0
      %v340 = vsel %vm317, %v298, 0
      %342 = vmatpush.bf16.msra.mxu0 0
      %343 = vmatpush.bf16.msra.mxu0 0
      %344 = vmatpush.bf16.msra.mxu0 0
      %345 = vmatpush.bf16.msra.mxu0 0
      %346 = vmatpush.bf16.msra.mxu0 0
      %347 = vmatpush.bf16.msra.mxu0 %v313
      %348 = vmatpush.bf16.msra.mxu0 %v312
      %349 = vmatpush.bf16.msra.mxu0 %v311
      %350 = vmatmul.bf16.gmra.mxu0 %v319
      %v351 = vpop.f32.mrf.mxu0
      %v352 = vadd.f32 %v258, %v351
      %v353 = vpop.f32.mrf.mxu0
      %v354 = vadd.f32 %v258, %v353
      %355 = vmatmul.bf16.gmra.mxu0 %v322
      %v356 = vpop.f32.mrf.mxu0
      %v357 = vadd.f32 %v258, %v356
      %v358 = vpop.f32.mrf.mxu0
      %v359 = vadd.f32 %v258, %v358
      %360 = vmatmul.bf16.gmra.mxu0 %v325
      %v361 = vpop.f32.mrf.mxu0
      %v362 = vadd.f32 %v258, %v361
      %v363 = vpop.f32.mrf.mxu0
      %v364 = vadd.f32 %v258, %v363
      %365 = vmatmul.bf16.gmra.mxu0 %v328
      %v366 = vpop.f32.mrf.mxu0
      %v367 = vadd.f32 %v258, %v366
      %v368 = vpop.f32.mrf.mxu0
      %v369 = vadd.f32 %v258, %v368
      %370 = vmatmul.bf16.gmra.mxu0 %v331
      %v371 = vpop.f32.mrf.mxu0
      %v372 = vadd.f32 %v258, %v371
      %v373 = vpop.f32.mrf.mxu0
      %v374 = vadd.f32 %v258, %v373
      %375 = vmatmul.bf16.gmra.mxu0 %v334
      %v376 = vpop.f32.mrf.mxu0
      %v377 = vadd.f32 %v258, %v376
      %v378 = vpop.f32.mrf.mxu0
      %v379 = vadd.f32 %v258, %v378
      %380 = vmatmul.bf16.gmra.mxu0 %v337
      %v381 = vpop.f32.mrf.mxu0
      %v382 = vadd.f32 %v258, %v381
      %v383 = vpop.f32.mrf.mxu0
      %v384 = vadd.f32 %v258, %v383
      %385 = vmatmul.bf16.gmra.mxu0 %v340
      %v386 = vpop.f32.mrf.mxu0
      %v387 = vadd.f32 %v258, %v386
      %v388 = vpop.f32.mrf.mxu0
      %v389 = vadd.f32 %v258, %v388
      %390 = vdwg.mxu0
      %v391 = vmax.f32 %v352, 0.0
      %v392 = vmax.f32 %v354, 0.0
      %v393 = vmax.f32 %v357, 0.0
      %v394 = vmax.f32 %v359, 0.0
      %v395 = vmax.f32 %v362, 0.0
      %v396 = vmax.f32 %v364, 0.0
      %v397 = vmax.f32 %v367, 0.0
      %v398 = vmax.f32 %v369, 0.0
      %v399 = vmax.f32 %v372, 0.0
      %v400 = vmax.f32 %v374, 0.0
      %v401 = vmax.f32 %v377, 0.0
      %v402 = vmax.f32 %v379, 0.0
      %v403 = vmax.f32 %v382, 0.0
      %v404 = vmax.f32 %v384, 0.0
      %v405 = vmax.f32 %v387, 0.0
      %v406 = vmax.f32 %v389, 0.0
      %v407 = vadd.f32 %v391, %v392
      %v408 = vrot.slane %v407, 4
      %v409 = vadd.f32 %v407, %v408
      %v410 = vrot.slane %v409, 2
      %v411 = vadd.f32 %v409, %v410
      %v412 = vrot.slane %v411, 1
      %v413 = vadd.f32 %v411, %v412
      %v414 = vadd.f32 %v393, %v394
      %v415 = vrot.slane %v414, 4
      %v416 = vadd.f32 %v414, %v415
      %v417 = vrot.slane %v416, 2
      %v418 = vadd.f32 %v416, %v417
      %v419 = vrot.slane %v418, 1
      %v420 = vadd.f32 %v418, %v419
      %v421 = vadd.f32 %v395, %v396
      %v422 = vrot.slane %v421, 4
      %v423 = vadd.f32 %v421, %v422
      %v424 = vrot.slane %v423, 2
      %v425 = vadd.f32 %v423, %v424
      %v426 = vrot.slane %v425, 1
      %v427 = vadd.f32 %v425, %v426
      %v428 = vadd.f32 %v397, %v398
      %v429 = vrot.slane %v428, 4
      %v430 = vadd.f32 %v428, %v429
      %v431 = vrot.slane %v430, 2
      %v432 = vadd.f32 %v430, %v431
      %v433 = vrot.slane %v432, 1
      %v434 = vadd.f32 %v432, %v433
      %v435 = vadd.f32 %v399, %v400
      %v436 = vrot.slane %v435, 4
      %v437 = vadd.f32 %v435, %v436
      %v438 = vrot.slane %v437, 2
      %v439 = vadd.f32 %v437, %v438
      %v440 = vrot.slane %v439, 1
      %v441 = vadd.f32 %v439, %v440
      %v442 = vadd.f32 %v401, %v402
      %v443 = vrot.slane %v442, 4
      %v444 = vadd.f32 %v442, %v443
      %v445 = vrot.slane %v444, 2
      %v446 = vadd.f32 %v444, %v445
      %v447 = vrot.slane %v446, 1
      %v448 = vadd.f32 %v446, %v447
      %v449 = vadd.f32 %v403, %v404
      %v450 = vrot.slane %v449, 4
      %v451 = vadd.f32 %v449, %v450
      %v452 = vrot.slane %v451, 2
      %v453 = vadd.f32 %v451, %v452
      %v454 = vrot.slane %v453, 1
      %v455 = vadd.f32 %v453, %v454
      %v456 = vadd.f32 %v405, %v406
      %v457 = vrot.slane %v456, 4
      %v458 = vadd.f32 %v456, %v457
      %v459 = vrot.slane %v458, 2
      %v460 = vadd.f32 %v458, %v459
      %v461 = vrot.slane %v460, 1
      %v462 = vadd.f32 %v460, %v461
      %v463 = vpack.c.bf16 %v413, %v413
      %v464 = vpack.c.bf16 %v420, %v420
      %v465 = vpack.c.bf16 %v427, %v427
      %v466 = vpack.c.bf16 %v434, %v434
      %v467 = vpack.c.bf16 %v441, %v441
      %v468 = vpack.c.bf16 %v448, %v448
      %v469 = vpack.c.bf16 %v455, %v455
      %v470 = vpack.c.bf16 %v462, %v462
      %v471 = vld [vmem:[%s2] sm:$0xf]
      %v472 = vld [vmem:[%s2 + $0x4] sm:$0xf]
      %v473 = vld [vmem:[%s2 + $0x8] sm:$0xf]
      %v474 = vld [vmem:[%s2 + $0xc] sm:$0xf]
      %v475 = vld [vmem:[%s2 + $0x10] sm:$0xf]
      %v476 = vld [vmem:[%s2 + $0x14] sm:$0xf]
      %v477 = vld [vmem:[%s2 + $0x18] sm:$0xf]
      %v478 = vld [vmem:[%s2 + $0x1c] sm:$0xf]
      %v479 = vld [vmem:[%s2 + $0x20] sm:$0xf]
      %v480 = vld [vmem:[%s2 + $0x24] sm:$0xf]
      %v481 = vld [vmem:[%s2 + $0x28] sm:$0xf]
      %v482 = vld [vmem:[%s2 + $0x2c] sm:$0xf]
      %v483 = vld [vmem:[%s2 + $0x30] sm:$0xf]
      %v484 = vld [vmem:[%s2 + $0x34] sm:$0xf]
      %v485 = vld [vmem:[%s2 + $0x38] sm:$0xf]
      %v486 = vld [vmem:[%s2 + $0x3c] sm:$0xf]
      %v487 = vld [vmem:[%s3 + $0x1] sm:$0x1]
      %v488 = vperm.slane %v487, 0
      %v497 = vunpack.c.l.b16 %v463
      %v498 = vunpack.c.l.b16 %v464
      %v499 = vunpack.c.l.b16 %v465
      %v500 = vunpack.c.l.b16 %v466
      %v501 = vunpack.c.l.b16 %v467
      %v502 = vunpack.c.l.b16 %v468
      %v503 = vunpack.c.l.b16 %v469
      %v504 = vunpack.c.l.b16 %v470
      %vm505 = vcmask 1041409
      %v506 = vsel %vm505, %v498, %v497
      %vm507 = vcmask 1042434
      %v508 = vsel %vm507, %v499, %v506
      %vm509 = vcmask 1043459
      %v510 = vsel %vm509, %v500, %v508
      %vm511 = vcmask 1044484
      %v512 = vsel %vm511, %v501, %v510
      %vm513 = vcmask 1045509
      %v514 = vsel %vm513, %v502, %v512
      %vm515 = vcmask 1046534
      %v516 = vsel %vm515, %v503, %v514
      %vm517 = vcmask 1047559
      %v518 = vsel %vm517, %v504, %v516
      %v519 = vpack.c.b16 %v518, %v518
      %v537 = vunpack.c.l.b16 %v471
      %v538 = vunpack.c.l.b16 %v472
      %v539 = vunpack.c.l.b16 %v473
      %v540 = vunpack.c.l.b16 %v474
      %v541 = vunpack.c.l.b16 %v475
      %v542 = vunpack.c.l.b16 %v476
      %v543 = vunpack.c.l.b16 %v477
      %v544 = vunpack.c.l.b16 %v478
      %v545 = vunpack.c.l.b16 %v479
      %v546 = vunpack.c.l.b16 %v480
      %v547 = vunpack.c.l.b16 %v481
      %v548 = vunpack.c.l.b16 %v482
      %v549 = vunpack.c.l.b16 %v483
      %v550 = vunpack.c.l.b16 %v484
      %v551 = vunpack.c.l.b16 %v485
      %v552 = vunpack.c.l.b16 %v486
      %v553 = vpack.c.b16 %v538, %v537
      %v554 = vpack.c.b16 %v540, %v539
      %v555 = vpack.c.b16 %v542, %v541
      %v556 = vpack.c.b16 %v544, %v543
      %v557 = vpack.c.b16 %v546, %v545
      %v558 = vpack.c.b16 %v548, %v547
      %v559 = vpack.c.b16 %v550, %v549
      %v560 = vpack.c.b16 %v552, %v551
      %569 = vmatpush.bf16.msra.mxu0 %v560
      %570 = vmatpush.bf16.msra.mxu0 %v559
      %571 = vmatpush.bf16.msra.mxu0 %v558
      %572 = vmatpush.bf16.msra.mxu0 %v557
      %573 = vmatpush.bf16.msra.mxu0 %v556
      %574 = vmatpush.bf16.msra.mxu0 %v555
      %575 = vmatpush.bf16.msra.mxu0 %v554
      %576 = vmatpush.bf16.msra.mxu0 %v553
      %577 = vmatmul.bf16.gmra.mxu0 %v519
      %v578 = vpop.f32.mrf.mxu0
      %v579 = vadd.f32 %v488, %v578
      %v580 = vpop.f32.mrf.mxu0
      %581 = vdwg.mxu0
      %582 = vst [vmem:[%s229] sm:$0xff] %v579
      %v583 = vlaneseq
      %v584 = vshrl.u32 %v583, 7
      %vm585 = vcmp.lt.s32.totalorder %v584, 0
      %v586 = vsub.s32 0, %v584
      %v587 = vsel %vm585, %v586, %v584
      %v588 = vshrl.u32 %v587, 3
      %v589 = vand.u32 %v587, 7
      %v590 = vsub.s32 0, %v589
      %v591 = vsel %vm585, %v590, %v589
      %vm592 = vcmp.ne.s32.totalorder %v591, 0
      %vm593 = vcmp.lt.s32.totalorder %v591, 0
      %vm594 = vmand %vm593, %vm592
      %v595 = vadd.s32 %v591, 8
      %v596 = vsel %vm594, %v595, %v591
      %vm597 = vcmp.eq.s32.totalorder %v596, 0
      %v598 = vrot.slane %v579, 7
      %v599 = vsel %vm597, 0.0, %v598
      %vm600 = vcmp.eq.s32.totalorder %v596, 7
      %v601 = vrot.slane %v579, 1
      %v602 = vsel %vm600, 0.0, %v601
      %603 = vrot.lane.b32.xlu0 %v579, 12
      %v604 = vpop.permute.xlu0 %603
      %v605 = vadd.f32 %v599, %v604
      %606 = vrot.lane.b32.xlu0 %v602, 24
      %v607 = vpop.permute.xlu0 %606
      %v608 = vadd.f32 %v605, %v607
      %v609 = vpack.c.bf16 %v608, %v608
      %s610 = scalar_lea.vmem %s2, 64
      %v611 = vld [vmem:[%s610] sm:$0xf]
      %v612 = vld [vmem:[%s610 + $0x4] sm:$0xf]
      %v613 = vld [vmem:[%s610 + $0x8] sm:$0xf]
      %v614 = vld [vmem:[%s610 + $0xc] sm:$0xf]
      %v615 = vld [vmem:[%s610 + $0x10] sm:$0xf]
      %v616 = vld [vmem:[%s610 + $0x14] sm:$0xf]
      %v617 = vld [vmem:[%s610 + $0x18] sm:$0xf]
      %v618 = vld [vmem:[%s610 + $0x1c] sm:$0xf]
      %v619 = vld [vmem:[%s610 + $0x20] sm:$0xf]
      %v620 = vld [vmem:[%s610 + $0x24] sm:$0xf]
      %v621 = vld [vmem:[%s610 + $0x28] sm:$0xf]
      %v622 = vld [vmem:[%s610 + $0x2c] sm:$0xf]
      %v623 = vld [vmem:[%s610 + $0x30] sm:$0xf]
      %v624 = vld [vmem:[%s610 + $0x34] sm:$0xf]
      %v625 = vld [vmem:[%s610 + $0x38] sm:$0xf]
      %v626 = vld [vmem:[%s610 + $0x3c] sm:$0xf]
      %v627 = vld [vmem:[%s3 + $0x2] sm:$0x1]
      %v628 = vperm.slane %v627, 0
      %v645 = vunpack.c.l.b16 %v611
      %v646 = vunpack.c.l.b16 %v612
      %v647 = vunpack.c.l.b16 %v613
      %v648 = vunpack.c.l.b16 %v614
      %v649 = vunpack.c.l.b16 %v615
      %v650 = vunpack.c.l.b16 %v616
      %v651 = vunpack.c.l.b16 %v617
      %v652 = vunpack.c.l.b16 %v618
      %v653 = vunpack.c.l.b16 %v619
      %v654 = vunpack.c.l.b16 %v620
      %v655 = vunpack.c.l.b16 %v621
      %v656 = vunpack.c.l.b16 %v622
      %v657 = vunpack.c.l.b16 %v623
      %v658 = vunpack.c.l.b16 %v624
      %v659 = vunpack.c.l.b16 %v625
      %v660 = vunpack.c.l.b16 %v626
      %v661 = vpack.c.b16 %v646, %v645
      %v662 = vpack.c.b16 %v648, %v647
      %v663 = vpack.c.b16 %v650, %v649
      %v664 = vpack.c.b16 %v652, %v651
      %v665 = vpack.c.b16 %v654, %v653
      %v666 = vpack.c.b16 %v656, %v655
      %v667 = vpack.c.b16 %v658, %v657
      %v668 = vpack.c.b16 %v660, %v659
      %677 = vmatpush.bf16.msra.mxu0 %v668
      %678 = vmatpush.bf16.msra.mxu0 %v667
      %679 = vmatpush.bf16.msra.mxu0 %v666
      %680 = vmatpush.bf16.msra.mxu0 %v665
      %681 = vmatpush.bf16.msra.mxu0 %v664
      %682 = vmatpush.bf16.msra.mxu0 %v663
      %683 = vmatpush.bf16.msra.mxu0 %v662
      %684 = vmatpush.bf16.msra.mxu0 %v661
      %685 = vmatmul.bf16.gmra.mxu0 %v609
      %v686 = vpop.f32.mrf.mxu0
      %v687 = vadd.f32 %v628, %v686
      %v688 = vpop.f32.mrf.mxu0
      %689 = vdwg.mxu0
      %v690 = vmax.f32 %v687, 0.0
      %v691 = vpack.c.bf16 %v690, %v690
      %s692 = scalar_lea.vmem %s2, 128
      %v693 = vld [vmem:[%s692] sm:$0xf]
      %v694 = vld [vmem:[%s692 + $0x4] sm:$0xf]
      %v695 = vld [vmem:[%s692 + $0x8] sm:$0xf]
      %v696 = vld [vmem:[%s692 + $0xc] sm:$0xf]
      %v697 = vld [vmem:[%s692 + $0x10] sm:$0xf]
      %v698 = vld [vmem:[%s692 + $0x14] sm:$0xf]
      %v699 = vld [vmem:[%s692 + $0x18] sm:$0xf]
      %v700 = vld [vmem:[%s692 + $0x1c] sm:$0xf]
      %v701 = vld [vmem:[%s692 + $0x20] sm:$0xf]
      %v702 = vld [vmem:[%s692 + $0x24] sm:$0xf]
      %v703 = vld [vmem:[%s692 + $0x28] sm:$0xf]
      %v704 = vld [vmem:[%s692 + $0x2c] sm:$0xf]
      %v705 = vld [vmem:[%s692 + $0x30] sm:$0xf]
      %v706 = vld [vmem:[%s692 + $0x34] sm:$0xf]
      %v707 = vld [vmem:[%s692 + $0x38] sm:$0xf]
      %v708 = vld [vmem:[%s692 + $0x3c] sm:$0xf]
      %v709 = vld [vmem:[%s3 + $0x3] sm:$0x1]
      %v710 = vperm.slane %v709, 0
      %v727 = vunpack.c.l.b16 %v693
      %v728 = vunpack.c.l.b16 %v694
      %v729 = vunpack.c.l.b16 %v695
      %v730 = vunpack.c.l.b16 %v696
      %v731 = vunpack.c.l.b16 %v697
      %v732 = vunpack.c.l.b16 %v698
      %v733 = vunpack.c.l.b16 %v699
      %v734 = vunpack.c.l.b16 %v700
      %v735 = vunpack.c.l.b16 %v701
      %v736 = vunpack.c.l.b16 %v702
      %v737 = vunpack.c.l.b16 %v703
      %v738 = vunpack.c.l.b16 %v704
      %v739 = vunpack.c.l.b16 %v705
      %v740 = vunpack.c.l.b16 %v706
      %v741 = vunpack.c.l.b16 %v707
      %v742 = vunpack.c.l.b16 %v708
      %v743 = vpack.c.b16 %v728, %v727
      %v744 = vpack.c.b16 %v730, %v729
      %v745 = vpack.c.b16 %v732, %v731
      %v746 = vpack.c.b16 %v734, %v733
      %v747 = vpack.c.b16 %v736, %v735
      %v748 = vpack.c.b16 %v738, %v737
      %v749 = vpack.c.b16 %v740, %v739
      %v750 = vpack.c.b16 %v742, %v741
      %759 = vmatpush.bf16.msra.mxu0 %v750
      %760 = vmatpush.bf16.msra.mxu0 %v749
      %761 = vmatpush.bf16.msra.mxu0 %v748
      %762 = vmatpush.bf16.msra.mxu0 %v747
      %763 = vmatpush.bf16.msra.mxu0 %v746
      %764 = vmatpush.bf16.msra.mxu0 %v745
      %765 = vmatpush.bf16.msra.mxu0 %v744
      %766 = vmatpush.bf16.msra.mxu0 %v743
      %767 = vmatmul.bf16.gmra.mxu0 %v691
      %v768 = vpop.f32.mrf.mxu0
      %v769 = vadd.f32 %v710, %v768
      %v770 = vpop.f32.mrf.mxu0
      %771 = vdwg.mxu0
      %772 = vst [vmem:[%s233] sm:$0xff] %v769
      %p773 = scmp.lt.s32.totalorder %s17, 1
      %s774 = scalar_select %p773, %s17, 1
      %s775 = smul.addr %s774, 8
      %s776 = scalar_lea.vmem %s4, %s775
      %p777 = scmp.lt.s32.totalorder %s17, 1
      %s778 = scalar_select %p777, %s17, 1
      %s779 = smul.addr %s778, 8
      %s780 = scalar_lea.vmem %s5, %s779
      // Predicated region
      $region37: #{spatial_temporal_forward.1} parent=35 // pred_check
        %p781 = pneg %p124
      $region38: #{spatial_temporal_forward.1} parent=35 // pred_check_branch
        %783 = sbr.rel (%p781) target = $region40
      $region39: #{spatial_temporal_forward.1} parent=35 // pred_region
        _
      $region40: #{spatial_temporal_forward.1} parent=35 // pred_fallthru
        _
      // Predicated region
      $region41: #{spatial_temporal_forward.1} parent=35 // pred_check
        %p784 = pneg %p150
      $region42: #{spatial_temporal_forward.1} parent=35 // pred_check_branch
        %786 = sbr.rel (%p784) target = $region44
      $region43: #{spatial_temporal_forward.1} parent=35 // pred_region
        _
      $region44: #{spatial_temporal_forward.1} parent=35 // pred_fallthru
        _
    $region36: #{spatial_temporal_forward.1} parent=5 // pred_fallthru
      _
    %p787 = scmp.le.s32.totalorder 2, %s12
    // Predicated region
    $region45: #{spatial_temporal_forward.1} parent=5 // pred_check
      %p788 = pneg %p787
    $region46: #{spatial_temporal_forward.1} parent=5 // pred_check_branch
      %790 = sbr.rel (%p788) target = $region48
    $region47: #{spatial_temporal_forward.1} parent=5 // pred_region
      %s791 = ssub.s32 %s12, 2
      // Predicated region
      $region49: #{spatial_temporal_forward.1} parent=47 // pred_check
        %p792 = pneg %p130
      $region50: #{spatial_temporal_forward.1} parent=47 // pred_check_branch
        %794 = sbr.rel (%p792) target = $region52
      $region51: #{spatial_temporal_forward.1} parent=47 // pred_region
        %p795 = scmp.lt.s32.totalorder %s18, 1
        %s796 = scalar_select %p795, %s18, 1
        %s797 = smul.addr %s796, 8
        %s798 = scalar_lea.vmem %s4, %s797
      $region52: #{spatial_temporal_forward.1} parent=47 // pred_fallthru
        _
      // Predicated region
      $region53: #{spatial_temporal_forward.1} parent=47 // pred_check
        %p799 = pneg %p156
      $region54: #{spatial_temporal_forward.1} parent=47 // pred_check_branch
        %801 = sbr.rel (%p799) target = $region56
      $region55: #{spatial_temporal_forward.1} parent=47 // pred_region
        %p802 = scmp.lt.s32.totalorder %s18, 1
        %s803 = scalar_select %p802, %s18, 1
        %s804 = smul.addr %s803, 8
        %s805 = scalar_lea.vmem %s5, %s804
      $region56: #{spatial_temporal_forward.1} parent=47 // pred_fallthru
        _
    $region48: #{spatial_temporal_forward.1} parent=5 // pred_fallthru
      _
  $region6: #{spatial_temporal_forward.1} parent=0 // loop_footer
    %s16 = sadd.s32 1, %s12
  $region7: #{spatial_temporal_forward.1} parent=0 // loop_footer_branch
    %11 = sbr.rel target = $region3
  $region8: #{spatial_temporal_forward.1} parent=0 // loop_exit
    _

</llo_original>
